<compile_context>
chip_gen: v7x
topology: tpu7x:2x2x1
jax: 0.10.0
libtpu: 0.0.40
codegen_flags: <defaults>
</compile_context>

<pallas_src>
import jax
import jax.numpy as jnp
from jax.experimental import pallas as pl
from jax.experimental.pallas import tpu as pltpu


# ----------------------------- kernel ---------------------------------------


def mlp_kernel(x_ref, w1_ref, b1_ref, w2_ref, b2_ref, o_ref):
    # Cast x to bf16 in-kernel (saves a whole wrapper-side HBM pad/cast pass).
    x = x_ref[...].astype(w1_ref.dtype)
    # fc1: (tm, 784) @ (784, Hp) on the MXU, bf16 operands, f32 accumulation.
    h = jnp.dot(x, w1_ref[...], preferred_element_type=jnp.float32)
    # Bias add + ReLU in f32 (VPU-friendly on every TPU generation).
    h = jnp.maximum(h + b1_ref[...], 0.0)
    # fc2: (tm, Hp) @ (Hp, Cp) — cast activation back to bf16 for the MXU.
    out = jnp.dot(h.astype(w2_ref.dtype), w2_ref[...],
                  preferred_element_type=jnp.float32)
    # Lane-dense (Cp = 128) unmasked store, bf16 writeback to halve HBM bytes.
    o_ref[...] = (out + b2_ref[...]).astype(o_ref.dtype)


# ----------------------------- wrappers --------------------------------------


def _round_up(x, m):
    return (x + m - 1) // m * m


def init_params(key, input_size, hidden, n_classes, dtype=jnp.float32):
    """PyTorch-nn.Linear-style init (uniform(-1/sqrt(fan_in), +1/sqrt(fan_in))).

    Weights are stored transposed, i.e. W1: (D, H), W2: (H, C), so the kernel
    computes x @ W directly.
    """
    k1, k2, k3, k4 = jax.random.split(key, 4)
    bound1 = 1.0 / (input_size ** 0.5)
    bound2 = 1.0 / (hidden ** 0.5)
    w1 = jax.random.uniform(k1, (input_size, hidden), dtype, -bound1, bound1)
    b1 = jax.random.uniform(k2, (1, hidden), dtype, -bound1, bound1)
    w2 = jax.random.uniform(k3, (hidden, n_classes), dtype, -bound2, bound2)
    b2 = jax.random.uniform(k4, (1, n_classes), dtype, -bound2, bound2)
    return w1, b1, w2, b2


def pad_params(w1, b1, w2, b2, compute_dtype=jnp.bfloat16):
    """Zero-pad params to 128-lane-aligned output dims; cast MXU operands to bf16.

    W1 is deliberately left UNPADDED on its K dim (784) so x can be streamed
    to the kernel unpadded. Zero padding of W1 columns / W2 rows / biases is
    mathematically inert. Done once at init.
    """
    D, H = w1.shape
    C = w2.shape[1]
    Hp, Cp = _round_up(H, 128), _round_up(C, 128)
    w1p = jnp.zeros((D, Hp), compute_dtype).at[:, :H].set(w1.astype(compute_dtype))
    b1p = jnp.zeros((1, Hp), jnp.float32).at[:, :H].set(b1.astype(jnp.float32))
    w2p = jnp.zeros((Hp, Cp), compute_dtype).at[:H, :C].set(w2.astype(compute_dtype))
    b2p = jnp.zeros((1, Cp), jnp.float32).at[:, :C].set(b2.astype(jnp.float32))
    return w1p, b1p, w2p, b2p


def mlp_forward(x, w1p, b1p, w2p, b2p, n_classes, *, tm=1024,
                out_dtype=jnp.float32):
    """Fused fc1 -> ReLU -> fc2 forward pass.

    x: (N, D) float array (flattened images, any float dtype — cast to bf16
    inside the kernel). Returns (N, n_classes) in `out_dtype`.
    """
    N, D = x.shape
    Dw, Hp = w1p.shape
    assert Dw == D, "W1 must be stored unpadded on its K dim: (D, Hp)"
    Cp = w2p.shape[1]

    # Batch tile: multiple of 8 sublanes, capped so the grid always has >= 2
    # steps (lets "parallel" shard the batch across both TensorCores on v7x).
    # Footprint at tm=1024 (f32 x): ~3.1 MiB x tile * 2 bufs + 0.25 MiB out * 2
    # + ~0.5 MiB resident weights  — far below 32 MiB scoped VMEM everywhere.
    tm = min(tm, _round_up(max(pl.cdiv(N, 2), 8), 8))
    grid = (pl.cdiv(N, tm),)

    out_padded = pl.pallas_call(
        mlp_kernel,
        out_shape=jax.ShapeDtypeStruct((N, Cp), jnp.bfloat16),
        grid_spec=pltpu.PrefetchScalarGridSpec(
            num_scalar_prefetch=0,
            grid=grid,
            in_specs=[
                pl.BlockSpec((tm, D), lambda i: (i, 0)),    # batch-tiled x (unpadded D)
                pl.BlockSpec((D, Hp), lambda i: (0, 0)),    # resident W1
                pl.BlockSpec((1, Hp), lambda i: (0, 0)),    # resident b1
                pl.BlockSpec((Hp, Cp), lambda i: (0, 0)),   # resident W2
                pl.BlockSpec((1, Cp), lambda i: (0, 0)),    # resident b2
            ],
            out_specs=pl.BlockSpec((tm, Cp), lambda i: (i, 0)),
        ),
        compiler_params=pltpu.CompilerParams(
            dimension_semantics=("parallel",),   # shard batch across TCs (v7x)
            vmem_limit_bytes=32 * 1024 * 1024,   # safe on v5e/v6e/v7x
        ),
    )(x, w1p, b1p, w2p, b2p)

    # Slice away class padding; ragged batch handled by masked output writes.
    return out_padded[:, :n_classes].astype(out_dtype)


# ----------------------------- example / check -------------------------------


if __name__ == "__main__":
    input_size = 784   # 28*28, matches the module
    hidden = 50
    n_classes = 10
    batch = 64         # matches the example x = torch.rand(64, 1, 28, 28)

    key = jax.random.PRNGKey(0)
    kx, kp = jax.random.split(key)

    # Image-shaped input like the PyTorch example, flattened for fc1.
    x_img = jax.random.uniform(kx, (batch, 1, 28, 28), jnp.float32)
    x = x_img.reshape(batch, -1)

    w1, b1, w2, b2 = init_params(kp, input_size, hidden, n_classes)
    w1p, b1p, w2p, b2p = pad_params(w1, b1, w2, b2)

    out = mlp_forward(x, w1p, b1p, w2p, b2p, n_classes)
    out = jax.block_until_ready(out)
    assert out.shape == (batch, n_classes)

    # Reference 1: same mixed-precision math (bf16 MXU inputs, f32 accumulate)
    # in plain JAX. Kernel additionally rounds the final store to bf16, so
    # tolerance is ~1 bf16 ulp of the output magnitude.
    xb = x.astype(jnp.bfloat16)
    h_ref = jnp.maximum(
        jnp.dot(xb, w1.astype(jnp.bfloat16), preferred_element_type=jnp.float32)
        + b1, 0.0)
    ref_bf16 = jnp.dot(h_ref.astype(jnp.bfloat16), w2.astype(jnp.bfloat16),
                       preferred_element_type=jnp.float32) + b2
    assert jnp.allclose(out, ref_bf16, atol=1e-2, rtol=1e-2)

    # Reference 2: pure-f32 math (what torch.nn.Linear computes) — looser
    # tolerance because of the intentional bf16 MXU inputs / bf16 writeback.
    ref_f32 = jnp.maximum(x @ w1 + b1, 0.0) @ w2 + b2
    assert jnp.allclose(out, ref_f32, atol=5e-2, rtol=5e-2)

    print("KERNEL_OK")
</pallas_src>

<mosaic_0001>
module attributes {stable_mosaic.version = 11 : i64} {
  func.func @mlp_kernel(%arg0: i32, %arg1: memref<32x784xf32, #tpu.memory_space<vmem>>, %arg2: memref<784x128xbf16, #tpu.memory_space<vmem>>, %arg3: memref<1x128xf32, #tpu.memory_space<vmem>>, %arg4: memref<128x128xbf16, #tpu.memory_space<vmem>>, %arg5: memref<1x128xf32, #tpu.memory_space<vmem>>, %arg6: memref<32x128xbf16, #tpu.memory_space<vmem>>) attributes {dimension_semantics = [#tpu.dimension_semantics<parallel>], iteration_bounds = array<i64: 2>, scalar_prefetch = 0 : i64, scratch_operands = 0 : i64, tpu.core_type = #tpu.core_type<tc>, window_params = [{transform_indices = @transform_0, window_bounds = array<i64: 32, 784>}, {pipeline_mode = #tpu.pipeline_mode<synchronous>, transform_indices = @transform_1, window_bounds = array<i64: 784, 128>}, {pipeline_mode = #tpu.pipeline_mode<synchronous>, transform_indices = @transform_2, window_bounds = array<i64: 1, 128>}, {pipeline_mode = #tpu.pipeline_mode<synchronous>, transform_indices = @transform_3, window_bounds = array<i64: 128, 128>}, {pipeline_mode = #tpu.pipeline_mode<synchronous>, transform_indices = @transform_4, window_bounds = array<i64: 1, 128>}, {transform_indices = @transform_5, window_bounds = array<i64: 32, 128>}]} {
    %c0 = arith.constant 0 : index
    %c0_0 = arith.constant 0 : index
    %0 = vector.load %arg1[%c0, %c0_0] : memref<32x784xf32, #tpu.memory_space<vmem>>, vector<32x784xf32>
    %1 = arith.truncf %0 : vector<32x784xf32> to vector<32x784xbf16>
    %c0_1 = arith.constant 0 : index
    %c0_2 = arith.constant 0 : index
    %2 = vector.load %arg2[%c0_1, %c0_2] : memref<784x128xbf16, #tpu.memory_space<vmem>>, vector<784x128xbf16>
    %cst = arith.constant dense<0.000000e+00> : vector<32x128xf32>
    %3 = tpu.matmul %1, %2, %cst {dimension_numbers = #tpu.dot_dimension_numbers<[1], [0], [0], [1], [0, 0, 1, 1], [], []>} : vector<32x784xbf16>, vector<784x128xbf16>, vector<32x128xf32> -> vector<32x128xf32>
    %c0_3 = arith.constant 0 : index
    %c0_4 = arith.constant 0 : index
    %4 = vector.load %arg3[%c0_3, %c0_4] : memref<1x128xf32, #tpu.memory_space<vmem>>, vector<1x128xf32>
    %5 = vector.broadcast %4 : vector<1x128xf32> to vector<32x128xf32>
    %6 = arith.addf %3, %5 : vector<32x128xf32>
    %cst_5 = arith.constant 0.000000e+00 : f32
    %7 = vector.broadcast %cst_5 : f32 to vector<32x128xf32>
    %8 = arith.maximumf %6, %7 : vector<32x128xf32>
    %9 = arith.truncf %8 : vector<32x128xf32> to vector<32x128xbf16>
    %c0_6 = arith.constant 0 : index
    %c0_7 = arith.constant 0 : index
    %10 = vector.load %arg4[%c0_6, %c0_7] : memref<128x128xbf16, #tpu.memory_space<vmem>>, vector<128x128xbf16>
    %cst_8 = arith.constant dense<0.000000e+00> : vector<32x128xf32>
    %11 = tpu.matmul %9, %10, %cst_8 {dimension_numbers = #tpu.dot_dimension_numbers<[1], [0], [0], [1], [0, 0, 1, 1], [], []>} : vector<32x128xbf16>, vector<128x128xbf16>, vector<32x128xf32> -> vector<32x128xf32>
    %c0_9 = arith.constant 0 : index
    %c0_10 = arith.constant 0 : index
    %12 = vector.load %arg5[%c0_9, %c0_10] : memref<1x128xf32, #tpu.memory_space<vmem>>, vector<1x128xf32>
    %13 = vector.broadcast %12 : vector<1x128xf32> to vector<32x128xf32>
    %14 = arith.addf %11, %13 : vector<32x128xf32>
    %15 = arith.truncf %14 : vector<32x128xf32> to vector<32x128xbf16>
    %c0_11 = arith.constant 0 : index
    %c0_12 = arith.constant 0 : index
    %16 = vector.load %arg6[%c0_11, %c0_12] : memref<32x128xbf16, #tpu.memory_space<vmem>>, vector<32x128xbf16>
    tpu.vector_store %arg6[%c0_11, %c0_12], %15 {strides = array<i32>} : memref<32x128xbf16, #tpu.memory_space<vmem>>, vector<32x128xbf16>,
    return
  }
  func.func @transform_0(%arg0: i32) -> (i32, i32) {
    %c0_i32 = arith.constant 0 : i32
    %c0_i32_0 = arith.constant 0 : i32
    return %arg0, %c0_i32 : i32, i32
  }
  func.func @transform_1(%arg0: i32) -> (i32, i32) {
    %c0_i32 = arith.constant 0 : i32
    %c0_i32_0 = arith.constant 0 : i32
    %c0_i32_1 = arith.constant 0 : i32
    return %c0_i32, %c0_i32_0 : i32, i32
  }
  func.func @transform_2(%arg0: i32) -> (i32, i32) {
    %c0_i32 = arith.constant 0 : i32
    %c0_i32_0 = arith.constant 0 : i32
    %c0_i32_1 = arith.constant 0 : i32
    return %c0_i32, %c0_i32_0 : i32, i32
  }
  func.func @transform_3(%arg0: i32) -> (i32, i32) {
    %c0_i32 = arith.constant 0 : i32
    %c0_i32_0 = arith.constant 0 : i32
    %c0_i32_1 = arith.constant 0 : i32
    return %c0_i32, %c0_i32_0 : i32, i32
  }
  func.func @transform_4(%arg0: i32) -> (i32, i32) {
    %c0_i32 = arith.constant 0 : i32
    %c0_i32_0 = arith.constant 0 : i32
    %c0_i32_1 = arith.constant 0 : i32
    return %c0_i32, %c0_i32_0 : i32, i32
  }
  func.func @transform_5(%arg0: i32) -> (i32, i32) {
    %c0_i32 = arith.constant 0 : i32
    %c0_i32_0 = arith.constant 0 : i32
    return %arg0, %c0_i32 : i32, i32
  }
}

</mosaic_0001>

<llo_original>
// kernel: tpu_custom_call.1
$region0: #{tpu_custom_call.1}
  #allocation0 [shape = 'u32[]', space=smem, size = 0x4, offset = 0x4, fixed_abs, tag = 'smem constant byte address 0x4 - core index']
  #allocation1 [shape = 'u32[144,128]{1,0:T(1,128)}', space=vmem, size = 0x12000, scoped, tag = 'internal scratch']
  %s0 = inlined_call_operand.hbm [shape: f32[64,784], index: 0, kind: input, shape index: {}]
  %s1 = inlined_call_operand.hbm [shape: bf16[784,128], index: 1, kind: input, shape index: {}]
  %s2 = inlined_call_operand.vmem [shape: f32[1,128], index: 2, kind: input, shape index: {}]
  %s3 = inlined_call_operand.hbm [shape: bf16[128,128], index: 3, kind: input, shape index: {}]
  %s4 = inlined_call_operand.vmem [shape: f32[1,128], index: 4, kind: input, shape index: {}]
  %s5 = inlined_call_operand.hbm [shape: bf16[64,128], index: 5, kind: output, shape index: {}]
  %s6 = sld [smem:[#allocation0]]
  $region65: #{tpu_custom_call.1} parent=0
    _
  %s8 = ssub.s32 1, %s6
  %s9 = scalar_select 0, %s8, %s6
  $region1: #{tpu_custom_call.1} parent=0
    #allocation2 [shape = 'u8[229376]{0}', space=vmem, size = 0x38000, scoped, tag = 'input window, operand 0']
    #allocation3 [shape = 's32[2]{0}', space=sflag, size = 0x8, scoped, tag = 'scoped memory for tpu_custom_call.1']
    #allocation4 [shape = 's32[2]{0}', space=sflag, size = 0x8, scoped, tag = 'scoped memory for tpu_custom_call.1']
    #allocation5 [shape = 'u8[200704]{0}', space=vmem, size = 0x31000, scoped, tag = 'input window, operand 1, single buffered']
    #allocation6 [shape = 's32[1]{0}', space=sflag, size = 0x4, scoped, tag = 'scoped memory for tpu_custom_call.1']
    #allocation7 [shape = 'u8[32768]{0}', space=vmem, size = 0x8000, scoped, tag = 'input window, operand 3, single buffered']
    #allocation8 [shape = 'u8[16384]{0}', space=vmem, size = 0x4000, scoped, tag = 'output window, operand 0']
    %10 = vsyncpa [#allocation3], 0
    %s11 = scalar_lea.sflag [#allocation3], 1
    %12 = vsyncpa %s11, 0
    %13 = vsyncpa [#allocation6], 0
    %14 = vsyncpa [#allocation4], 0
    %s15 = scalar_lea.sflag [#allocation4], 1
    %16 = vsyncpa %s15, 0
    loop: start=0, step=1, limit=4
    $region2: #{tpu_custom_call.1} parent=1 // loop_pre_header
      _
    $region3: #{tpu_custom_call.1} parent=1 // loop_header
      %s18 = sphi 0, %s22
      %p19 = scmp.ge.s32.totalorder %s18, 4
      %s28 = sphi 0, %s30
      %s31 = sphi 0, %s28
      %s32 = sphi 0, %s31
      %s48 = sphi 0, %s32
      %s52 = sphi 0, %s52
      %s54 = sphi 0, %s52
      %s55 = sphi 0, %s54
      %s69 = sphi 0, %s55
      %s73 = sphi 0, %s73
      %s75 = sphi 0, %s73
      %s76 = sphi 0, %s75
      %s90 = sphi 0, %s76
      %s94 = sphi 0, %s94
      %s96 = sphi 0, %s94
      %s97 = sphi 0, %s96
      %s111 = sphi 0, %s97
      %s115 = sphi 0, %s115
      %s117 = sphi 0, %s115
      %s118 = sphi 0, %s117
      %s132 = sphi 0, %s118
      %s138 = sphi 0, %s140
      %s141 = sphi 0, %s138
      %s142 = sphi 0, %s141
      %s158 = sphi 0, %s142
    $region4: #{tpu_custom_call.1} parent=1 // loop_header_branch
      %21 = sbr.rel (%p19) target = $region8
    $region5: #{tpu_custom_call.1} parent=1 // loop_body
      %s23 = ssub.s32 %s18, 1
      %s24 = ssub.s32 %s18, 2
      %s25 = sadd.s32 %s18, 1
      %s26 = ssub.s32 %s18, %s25
      %p27 = scmp.eq.s32.totalorder %s26, 0
      %s29 = sadd.s32 %s28, 1
      %s30 = scalar_select %p27, %s28, %s29
      %p33 = pneg %p27
      %p34 = scmp.eq.s32.totalorder %s18, 1
      %p35 = por %p33, %p34
      %p36 = scmp.ne.s32.totalorder %s28, %s31
      %p37 = scmp.eq.s32.totalorder %s18, 0
      %p38 = por %p36, %p37
      %p39 = scmp.ne.s32.totalorder %s28, %s31
      %p40 = scmp.eq.s32.totalorder %s23, 1
      %p41 = por %p39, %p40
      %p42 = scmp.ne.s32.totalorder %s31, %s32
      %p43 = scmp.eq.s32.totalorder %s23, 0
      %p44 = por %p42, %p43
      %p45 = scmp.ne.s32.totalorder %s31, %s32
      %p46 = scmp.eq.s32.totalorder %s24, 1
      %p47 = por %p45, %p46
      %p49 = scmp.ne.s32.totalorder %s32, %s48
      %p50 = scmp.eq.s32.totalorder %s24, 0
      %p51 = por %p49, %p50
      %s53 = sadd.s32 %s52, 1
      %p56 = scmp.eq.s32.totalorder %s18, 1
      %p57 = scmp.ne.s32.totalorder %s52, %s54
      %p58 = scmp.eq.s32.totalorder %s18, 0
      %p59 = por %p57, %p58
      %p60 = scmp.ne.s32.totalorder %s52, %s54
      %p61 = scmp.eq.s32.totalorder %s23, 1
      %p62 = por %p60, %p61
      %p63 = scmp.ne.s32.totalorder %s54, %s55
      %p64 = scmp.eq.s32.totalorder %s23, 0
      %p65 = por %p63, %p64
      %p66 = scmp.ne.s32.totalorder %s54, %s55
      %p67 = scmp.eq.s32.totalorder %s24, 1
      %p68 = por %p66, %p67
      %p70 = scmp.ne.s32.totalorder %s55, %s69
      %p71 = scmp.eq.s32.totalorder %s24, 0
      %p72 = por %p70, %p71
      %s74 = sadd.s32 %s73, 1
      %p77 = scmp.eq.s32.totalorder %s18, 1
      %p78 = scmp.ne.s32.totalorder %s73, %s75
      %p79 = scmp.eq.s32.totalorder %s18, 0
      %p80 = por %p78, %p79
      %p81 = scmp.ne.s32.totalorder %s73, %s75
      %p82 = scmp.eq.s32.totalorder %s23, 1
      %p83 = por %p81, %p82
      %p84 = scmp.ne.s32.totalorder %s75, %s76
      %p85 = scmp.eq.s32.totalorder %s23, 0
      %p86 = por %p84, %p85
      %p87 = scmp.ne.s32.totalorder %s75, %s76
      %p88 = scmp.eq.s32.totalorder %s24, 1
      %p89 = por %p87, %p88
      %p91 = scmp.ne.s32.totalorder %s76, %s90
      %p92 = scmp.eq.s32.totalorder %s24, 0
      %p93 = por %p91, %p92
      %s95 = sadd.s32 %s94, 1
      %p98 = scmp.eq.s32.totalorder %s18, 1
      %p99 = scmp.ne.s32.totalorder %s94, %s96
      %p100 = scmp.eq.s32.totalorder %s18, 0
      %p101 = por %p99, %p100
      %p102 = scmp.ne.s32.totalorder %s94, %s96
      %p103 = scmp.eq.s32.totalorder %s23, 1
      %p104 = por %p102, %p103
      %p105 = scmp.ne.s32.totalorder %s96, %s97
      %p106 = scmp.eq.s32.totalorder %s23, 0
      %p107 = por %p105, %p106
      %p108 = scmp.ne.s32.totalorder %s96, %s97
      %p109 = scmp.eq.s32.totalorder %s24, 1
      %p110 = por %p108, %p109
      %p112 = scmp.ne.s32.totalorder %s97, %s111
      %p113 = scmp.eq.s32.totalorder %s24, 0
      %p114 = por %p112, %p113
      %s116 = sadd.s32 %s115, 1
      %p119 = scmp.eq.s32.totalorder %s18, 1
      %p120 = scmp.ne.s32.totalorder %s115, %s117
      %p121 = scmp.eq.s32.totalorder %s18, 0
      %p122 = por %p120, %p121
      %p123 = scmp.ne.s32.totalorder %s115, %s117
      %p124 = scmp.eq.s32.totalorder %s23, 1
      %p125 = por %p123, %p124
      %p126 = scmp.ne.s32.totalorder %s117, %s118
      %p127 = scmp.eq.s32.totalorder %s23, 0
      %p128 = por %p126, %p127
      %p129 = scmp.ne.s32.totalorder %s117, %s118
      %p130 = scmp.eq.s32.totalorder %s24, 1
      %p131 = por %p129, %p130
      %p133 = scmp.ne.s32.totalorder %s118, %s132
      %p134 = scmp.eq.s32.totalorder %s24, 0
      %p135 = por %p133, %p134
      %s136 = ssub.s32 %s18, %s25
      %p137 = scmp.eq.s32.totalorder %s136, 0
      %s139 = sadd.s32 %s138, 1
      %s140 = scalar_select %p137, %s138, %s139
      %p143 = pneg %p137
      %p144 = scmp.eq.s32.totalorder %s18, 1
      %p145 = por %p143, %p144
      %p146 = scmp.ne.s32.totalorder %s138, %s141
      %p147 = scmp.eq.s32.totalorder %s18, 0
      %p148 = por %p146, %p147
      %p149 = scmp.ne.s32.totalorder %s138, %s141
      %p150 = scmp.eq.s32.totalorder %s23, 1
      %p151 = por %p149, %p150
      %p152 = scmp.ne.s32.totalorder %s141, %s142
      %p153 = scmp.eq.s32.totalorder %s23, 0
      %p154 = por %p152, %p153
      %p155 = scmp.ne.s32.totalorder %s141, %s142
      %p156 = scmp.eq.s32.totalorder %s24, 1
      %p157 = por %p155, %p156
      %p159 = scmp.ne.s32.totalorder %s142, %s158
      %p160 = scmp.eq.s32.totalorder %s24, 0
      %p161 = por %p159, %p160
      %p162 = scmp.le.s32.totalorder 1, %s18
      %p163 = scmp.lt.s32.totalorder %s18, 3
      %p164 = pnand %p162, %p163
      %p165 = pneg %p164
      // Predicated region
      $region9: #{tpu_custom_call.1} parent=5 // pred_check
        _
      $region10: #{tpu_custom_call.1} parent=5 // pred_check_branch
        %167 = sbr.rel (%p164) target = $region12
      $region11: #{tpu_custom_call.1} parent=5 // pred_region
        %s168 = ssub.s32 %s18, 1
        // Predicated region
        $region13: #{tpu_custom_call.1} parent=11 // pred_check
          %p169 = pneg %p65
        $region14: #{tpu_custom_call.1} parent=11 // pred_check_branch
          %171 = sbr.rel (%p169) target = $region16
        $region15: #{tpu_custom_call.1} parent=11 // pred_region
          %s173 = ssub.s32 6272, 6272
          %174 = vsyncadd [#allocation6], %s173
          %s175 = sshll.u32 [#allocation5], 4
          %s176 = int_to_ptr.vmem [resolvable:$true] %s175
          %181 = dma.hbm_to_vmem [thread:$0]  %s1, 6272, %s176, [#allocation6], 64, 64, 4
        $region16: #{tpu_custom_call.1} parent=11 // pred_fallthru
          _
        // Predicated region
        $region17: #{tpu_custom_call.1} parent=11 // pred_check
          %p182 = pneg %p86
        $region18: #{tpu_custom_call.1} parent=11 // pred_check_branch
          %184 = sbr.rel (%p182) target = $region20
        $region19: #{tpu_custom_call.1} parent=11 // pred_region
          _
        $region20: #{tpu_custom_call.1} parent=11 // pred_fallthru
          _
        // Predicated region
        $region21: #{tpu_custom_call.1} parent=11 // pred_check
          %p185 = pneg %p107
        $region22: #{tpu_custom_call.1} parent=11 // pred_check_branch
          %187 = sbr.rel (%p185) target = $region24
        $region23: #{tpu_custom_call.1} parent=11 // pred_region
          %s189 = ssub.s32 1024, 1024
          %190 = vsyncadd [#allocation6], %s189
          %s191 = sshll.u32 [#allocation7], 4
          %s192 = int_to_ptr.vmem [resolvable:$true] %s191
          %197 = dma.hbm_to_vmem [thread:$0]  %s3, 1024, %s192, [#allocation6], 64, 64, 4
        $region24: #{tpu_custom_call.1} parent=11 // pred_fallthru
          _
        // Predicated region
        $region25: #{tpu_custom_call.1} parent=11 // pred_check
          %p198 = pneg %p128
        $region26: #{tpu_custom_call.1} parent=11 // pred_check_branch
          %200 = sbr.rel (%p198) target = $region28
        $region27: #{tpu_custom_call.1} parent=11 // pred_region
          _
        $region28: #{tpu_custom_call.1} parent=11 // pred_fallthru
          _
      $region12: #{tpu_custom_call.1} parent=5 // pred_fallthru
        _
      %p201 = scmp.lt.s32.totalorder %s18, 2
      // Predicated region
      $region29: #{tpu_custom_call.1} parent=5 // pred_check
        %p202 = pneg %p201
      $region30: #{tpu_custom_call.1} parent=5 // pred_check_branch
        %204 = sbr.rel (%p202) target = $region32
      $region31: #{tpu_custom_call.1} parent=5 // pred_region
        // Predicated region
        $region33: #{tpu_custom_call.1} parent=31 // pred_check
          %p205 = pneg %p38
        $region34: #{tpu_custom_call.1} parent=31 // pred_check_branch
          %207 = sbr.rel (%p205) target = $region36
        $region35: #{tpu_custom_call.1} parent=31 // pred_region
          %s208 = sand.u32 %s28, 1
          %s209 = scalar_lea.sflag [#allocation3], %s208
          %s210 = sand.u32 %s28, 1
          %s211 = smul.addr %s210, 224
          %s212 = scalar_lea.vmem [#allocation2], %s211
          %s213 = smul.u32 4, %s18
          %s215 = ssub.s32 3584, 3584
          %216 = vsyncadd %s209, %s215
          %s217 = smul.addr %s213, 7
          %s218 = smul.addr %s217, 128
          %s219 = scalar_lea.hbm %s0, %s218
          %s220 = sshll.u32 %s212, 4
          %s221 = int_to_ptr.vmem [resolvable:$true] %s220
          %226 = dma.hbm_to_vmem [thread:$0]  %s219, 3584, %s221, %s209, 896, 896, 56
        $region36: #{tpu_custom_call.1} parent=31 // pred_fallthru
          _
      $region32: #{tpu_custom_call.1} parent=5 // pred_fallthru
        _
      %p227 = scmp.le.s32.totalorder 1, %s18
      %p228 = scmp.lt.s32.totalorder %s18, 3
      %p229 = pnand %p227, %p228
      %p230 = pneg %p229
      // Predicated region
      $region37: #{tpu_custom_call.1} parent=5 // pred_check
        _
      $region38: #{tpu_custom_call.1} parent=5 // pred_check_branch
        %232 = sbr.rel (%p229) target = $region40
      $region39: #{tpu_custom_call.1} parent=5 // pred_region
        %s233 = ssub.s32 %s18, 1
        %s234 = sand.u32 %s31, 1
        %s235 = scalar_lea.sflag [#allocation3], %s234
        %s236 = sand.u32 %s31, 1
        %s237 = smul.addr %s236, 224
        %s238 = scalar_lea.vmem [#allocation2], %s237
        // Predicated region
        $region41: #{tpu_custom_call.1} parent=39 // pred_check
          %p239 = pneg %p44
        $region42: #{tpu_custom_call.1} parent=39 // pred_check_branch
          %241 = sbr.rel (%p239) target = $region44
        $region43: #{tpu_custom_call.1} parent=39 // pred_region
          %242 = dma.done %s235, 3584
        $region44: #{tpu_custom_call.1} parent=39 // pred_fallthru
          _
        // Predicated region
        $region45: #{tpu_custom_call.1} parent=39 // pred_check
          %p243 = pneg %p65
        $region46: #{tpu_custom_call.1} parent=39 // pred_check_branch
          %245 = sbr.rel (%p243) target = $region48
        $region47: #{tpu_custom_call.1} parent=39 // pred_region
          %246 = dma.done [#allocation6], 6272
        $region48: #{tpu_custom_call.1} parent=39 // pred_fallthru
          _
        // Predicated region
        $region49: #{tpu_custom_call.1} parent=39 // pred_check
          %p247 = pneg %p107
        $region50: #{tpu_custom_call.1} parent=39 // pred_check_branch
          %249 = sbr.rel (%p247) target = $region52
        $region51: #{tpu_custom_call.1} parent=39 // pred_region
          %250 = dma.done [#allocation6], 1024
        $region52: #{tpu_custom_call.1} parent=39 // pred_fallthru
          _
        %s251 = sand.u32 %s31, 1
        %s252 = scalar_lea.sflag [#allocation3], %s251
        %s253 = sand.u32 %s31, 1
        %s254 = smul.addr %s253, 224
        %s255 = scalar_lea.vmem [#allocation2], %s254
        %p256 = pneg %p44
        %p257 = pneg %p41
        %p258 = pneg %p65
        %p259 = pneg %p62
        %p260 = pneg %p86
        %p261 = pneg %p83
        %p262 = pneg %p107
        %p263 = pneg %p104
        %p264 = pneg %p128
        %p265 = pneg %p125
        %p266 = pneg %p154
        %p267 = pneg %p151
        %s268 = sand.u32 %s141, 1
        %s269 = scalar_lea.sflag [#allocation4], %s268
        %s270 = sand.u32 %s141, 1
        %s271 = smul.addr %s270, 16
        %s272 = scalar_lea.vmem [#allocation8], %s271
        %s273 = smul.u32 4, %s23
        %s274 = smul.u32 4, %s23
        %v276 = vld [vmem:[%s238] sm:$0xff]
        %v277 = vld [vmem:[%s238 + $0x8] sm:$0xff]
        %v278 = vld [vmem:[%s238 + $0x10] sm:$0xff]
        %v279 = vld [vmem:[%s238 + $0x18] sm:$0xff]
        %v280 = vld [vmem:[%s238 + $0x20] sm:$0xff]
        %v281 = vld [vmem:[%s238 + $0x28] sm:$0xff]
        %v282 = vld [vmem:[%s238 + $0x30] sm:$0xff]
        %v283 = vld [vmem:[%s238 + $0x38] sm:$0xff]
        %v284 = vld [vmem:[%s238 + $0x40] sm:$0xff]
        %v285 = vld [vmem:[%s238 + $0x48] sm:$0xff]
        %v286 = vld [vmem:[%s238 + $0x50] sm:$0xff]
        %v287 = vld [vmem:[%s238 + $0x58] sm:$0xff]
        %v288 = vld [vmem:[%s238 + $0x60] sm:$0xff]
        %v289 = vld [vmem:[%s238 + $0x68] sm:$0xff]
        %v290 = vld [vmem:[%s238 + $0x70] sm:$0xff]
        %v291 = vld [vmem:[%s238 + $0x78] sm:$0xff]
        %v292 = vld [vmem:[%s238 + $0x80] sm:$0xff]
        %v293 = vld [vmem:[%s238 + $0x88] sm:$0xff]
        %v294 = vld [vmem:[%s238 + $0x90] sm:$0xff]
        %v295 = vld [vmem:[%s238 + $0x98] sm:$0xff]
        %v296 = vld [vmem:[%s238 + $0xa0] sm:$0xff]
        %v297 = vld [vmem:[%s238 + $0xa8] sm:$0xff]
        %v298 = vld [vmem:[%s238 + $0xb0] sm:$0xff]
        %v299 = vld [vmem:[%s238 + $0xb8] sm:$0xff]
        %v300 = vld [vmem:[%s238 + $0xc0] sm:$0xff]
        %v301 = vld [vmem:[%s238 + $0xc8] sm:$0xff]
        %v302 = vld [vmem:[%s238 + $0xd0] sm:$0xff]
        %v303 = vld [vmem:[%s238 + $0xd8] sm:$0xff]
        %v304 = vpack.c.bf16 %v283, %v276
        %v305 = vpack.c.bf16 %v284, %v277
        %v306 = vpack.c.bf16 %v285, %v278
        %v307 = vpack.c.bf16 %v286, %v279
        %v308 = vpack.c.bf16 %v287, %v280
        %v309 = vpack.c.bf16 %v288, %v281
        %v310 = vpack.c.bf16 %v289, %v282
        %v311 = vpack.c.bf16 %v297, %v290
        %v312 = vpack.c.bf16 %v298, %v291
        %v313 = vpack.c.bf16 %v299, %v292
        %v314 = vpack.c.bf16 %v300, %v293
        %v315 = vpack.c.bf16 %v301, %v294
        %v316 = vpack.c.bf16 %v302, %v295
        %v317 = vpack.c.bf16 %v303, %v296
        %v318 = vld [vmem:[#allocation5] sm:$0xf]
        %v319 = vld [vmem:[#allocation5 + $0x4] sm:$0xf]
        %v320 = vld [vmem:[#allocation5 + $0x8] sm:$0xf]
        %v321 = vld [vmem:[#allocation5 + $0xc] sm:$0xf]
        %v322 = vld [vmem:[#allocation5 + $0x10] sm:$0xf]
        %v323 = vld [vmem:[#allocation5 + $0x14] sm:$0xf]
        %v324 = vld [vmem:[#allocation5 + $0x18] sm:$0xf]
        %v325 = vld [vmem:[#allocation5 + $0x1c] sm:$0xf]
        %v326 = vld [vmem:[#allocation5 + $0x20] sm:$0xf]
        %v327 = vld [vmem:[#allocation5 + $0x24] sm:$0xf]
        %v328 = vld [vmem:[#allocation5 + $0x28] sm:$0xf]
        %v329 = vld [vmem:[#allocation5 + $0x2c] sm:$0xf]
        %v330 = vld [vmem:[#allocation5 + $0x30] sm:$0xf]
        %v331 = vld [vmem:[#allocation5 + $0x34] sm:$0xf]
        %v332 = vld [vmem:[#allocation5 + $0x38] sm:$0xf]
        %v333 = vld [vmem:[#allocation5 + $0x3c] sm:$0xf]
        %v334 = vld [vmem:[#allocation5 + $0x40] sm:$0xf]
        %v335 = vld [vmem:[#allocation5 + $0x44] sm:$0xf]
        %v336 = vld [vmem:[#allocation5 + $0x48] sm:$0xf]
        %v337 = vld [vmem:[#allocation5 + $0x4c] sm:$0xf]
        %v338 = vld [vmem:[#allocation5 + $0x50] sm:$0xf]
        %v339 = vld [vmem:[#allocation5 + $0x54] sm:$0xf]
        %v340 = vld [vmem:[#allocation5 + $0x58] sm:$0xf]
        %v341 = vld [vmem:[#allocation5 + $0x5c] sm:$0xf]
        %v342 = vld [vmem:[#allocation5 + $0x60] sm:$0xf]
        %v343 = vld [vmem:[#allocation5 + $0x64] sm:$0xf]
        %v344 = vld [vmem:[#allocation5 + $0x68] sm:$0xf]
        %v345 = vld [vmem:[#allocation5 + $0x6c] sm:$0xf]
        %v346 = vld [vmem:[#allocation5 + $0x70] sm:$0xf]
        %v347 = vld [vmem:[#allocation5 + $0x74] sm:$0xf]
        %v348 = vld [vmem:[#allocation5 + $0x78] sm:$0xf]
        %v349 = vld [vmem:[#allocation5 + $0x7c] sm:$0xf]
        %v350 = vld [vmem:[#allocation5 + $0x80] sm:$0xf]
        %v351 = vld [vmem:[#allocation5 + $0x84] sm:$0xf]
        %v352 = vld [vmem:[#allocation5 + $0x88] sm:$0xf]
        %v353 = vld [vmem:[#allocation5 + $0x8c] sm:$0xf]
        %v354 = vld [vmem:[#allocation5 + $0x90] sm:$0xf]
        %v355 = vld [vmem:[#allocation5 + $0x94] sm:$0xf]
        %v356 = vld [vmem:[#allocation5 + $0x98] sm:$0xf]
        %v357 = vld [vmem:[#allocation5 + $0x9c] sm:$0xf]
        %v358 = vld [vmem:[#allocation5 + $0xa0] sm:$0xf]
        %v359 = vld [vmem:[#allocation5 + $0xa4] sm:$0xf]
        %v360 = vld [vmem:[#allocation5 + $0xa8] sm:$0xf]
        %v361 = vld [vmem:[#allocation5 + $0xac] sm:$0xf]
        %v362 = vld [vmem:[#allocation5 + $0xb0] sm:$0xf]
        %v363 = vld [vmem:[#allocation5 + $0xb4] sm:$0xf]
        %v364 = vld [vmem:[#allocation5 + $0xb8] sm:$0xf]
        %v365 = vld [vmem:[#allocation5 + $0xbc] sm:$0xf]
        %v366 = vld [vmem:[#allocation5 + $0xc0] sm:$0xf]
        %v367 = vld [vmem:[#allocation5 + $0xc4] sm:$0xf]
        %v368 = vld [vmem:[#allocation5 + $0xc8] sm:$0xf]
        %v369 = vld [vmem:[#allocation5 + $0xcc] sm:$0xf]
        %v370 = vld [vmem:[#allocation5 + $0xd0] sm:$0xf]
        %v371 = vld [vmem:[#allocation5 + $0xd4] sm:$0xf]
        %v372 = vld [vmem:[#allocation5 + $0xd8] sm:$0xf]
        %v373 = vld [vmem:[#allocation5 + $0xdc] sm:$0xf]
        %v374 = vld [vmem:[#allocation5 + $0xe0] sm:$0xf]
        %v375 = vld [vmem:[#allocation5 + $0xe4] sm:$0xf]
        %v376 = vld [vmem:[#allocation5 + $0xe8] sm:$0xf]
        %v377 = vld [vmem:[#allocation5 + $0xec] sm:$0xf]
        %v378 = vld [vmem:[#allocation5 + $0xf0] sm:$0xf]
        %v379 = vld [vmem:[#allocation5 + $0xf4] sm:$0xf]
        %v380 = vld [vmem:[#allocation5 + $0xf8] sm:$0xf]
        %v381 = vld [vmem:[#allocation5 + $0xfc] sm:$0xf]
        %v382 = vld [vmem:[#allocation5 + $0x100] sm:$0xf]
        %v383 = vld [vmem:[#allocation5 + $0x104] sm:$0xf]
        %v384 = vld [vmem:[#allocation5 + $0x108] sm:$0xf]
        %v385 = vld [vmem:[#allocation5 + $0x10c] sm:$0xf]
        %v386 = vld [vmem:[#allocation5 + $0x110] sm:$0xf]
        %v387 = vld [vmem:[#allocation5 + $0x114] sm:$0xf]
        %v388 = vld [vmem:[#allocation5 + $0x118] sm:$0xf]
        %v389 = vld [vmem:[#allocation5 + $0x11c] sm:$0xf]
        %v390 = vld [vmem:[#allocation5 + $0x120] sm:$0xf]
        %v391 = vld [vmem:[#allocation5 + $0x124] sm:$0xf]
        %v392 = vld [vmem:[#allocation5 + $0x128] sm:$0xf]
        %v393 = vld [vmem:[#allocation5 + $0x12c] sm:$0xf]
        %v394 = vld [vmem:[#allocation5 + $0x130] sm:$0xf]
        %v395 = vld [vmem:[#allocation5 + $0x134] sm:$0xf]
        %v396 = vld [vmem:[#allocation5 + $0x138] sm:$0xf]
        %v397 = vld [vmem:[#allocation5 + $0x13c] sm:$0xf]
        %v398 = vld [vmem:[#allocation5 + $0x140] sm:$0xf]
        %v399 = vld [vmem:[#allocation5 + $0x144] sm:$0xf]
        %v400 = vld [vmem:[#allocation5 + $0x148] sm:$0xf]
        %v401 = vld [vmem:[#allocation5 + $0x14c] sm:$0xf]
        %v402 = vld [vmem:[#allocation5 + $0x150] sm:$0xf]
        %v403 = vld [vmem:[#allocation5 + $0x154] sm:$0xf]
        %v404 = vld [vmem:[#allocation5 + $0x158] sm:$0xf]
        %v405 = vld [vmem:[#allocation5 + $0x15c] sm:$0xf]
        %v406 = vld [vmem:[#allocation5 + $0x160] sm:$0xf]
        %v407 = vld [vmem:[#allocation5 + $0x164] sm:$0xf]
        %v408 = vld [vmem:[#allocation5 + $0x168] sm:$0xf]
        %v409 = vld [vmem:[#allocation5 + $0x16c] sm:$0xf]
        %v410 = vld [vmem:[#allocation5 + $0x170] sm:$0xf]
        %v411 = vld [vmem:[#allocation5 + $0x174] sm:$0xf]
        %v412 = vld [vmem:[#allocation5 + $0x178] sm:$0xf]
        %v413 = vld [vmem:[#allocation5 + $0x17c] sm:$0xf]
        %v414 = vld [vmem:[#allocation5 + $0x180] sm:$0xf]
        %v415 = vld [vmem:[#allocation5 + $0x184] sm:$0xf]
        %v416 = vld [vmem:[%s2] sm:$0x1]
        %v418 = vlaneseq
        %v419 = vshrl.u32 %v418, 7
        %v420 = vsub.s32 0, %v419
        %v421 = vrot.slane %v416, %v420
        %v521 = vunpack.c.l.b16 %v318
        %v522 = vunpack.c.l.b16 %v319
        %v523 = vunpack.c.l.b16 %v320
        %v524 = vunpack.c.l.b16 %v321
        %v525 = vunpack.c.l.b16 %v322
        %v526 = vunpack.c.l.b16 %v323
        %v527 = vunpack.c.l.b16 %v324
        %v528 = vunpack.c.l.b16 %v325
        %v529 = vunpack.c.l.b16 %v326
        %v530 = vunpack.c.l.b16 %v327
        %v531 = vunpack.c.l.b16 %v328
        %v532 = vunpack.c.l.b16 %v329
        %v533 = vunpack.c.l.b16 %v330
        %v534 = vunpack.c.l.b16 %v331
        %v535 = vunpack.c.l.b16 %v332
        %v536 = vunpack.c.l.b16 %v333
        %v537 = vunpack.c.l.b16 %v334
        %v538 = vunpack.c.l.b16 %v335
        %v539 = vunpack.c.l.b16 %v336
        %v540 = vunpack.c.l.b16 %v337
        %v541 = vunpack.c.l.b16 %v338
        %v542 = vunpack.c.l.b16 %v339
        %v543 = vunpack.c.l.b16 %v340
        %v544 = vunpack.c.l.b16 %v341
        %v545 = vunpack.c.l.b16 %v342
        %v546 = vunpack.c.l.b16 %v343
        %v547 = vunpack.c.l.b16 %v344
        %v548 = vunpack.c.l.b16 %v345
        %v549 = vunpack.c.l.b16 %v346
        %v550 = vunpack.c.l.b16 %v347
        %v551 = vunpack.c.l.b16 %v348
        %v552 = vunpack.c.l.b16 %v349
        %v553 = vunpack.c.l.b16 %v350
        %v554 = vunpack.c.l.b16 %v351
        %v555 = vunpack.c.l.b16 %v352
        %v556 = vunpack.c.l.b16 %v353
        %v557 = vunpack.c.l.b16 %v354
        %v558 = vunpack.c.l.b16 %v355
        %v559 = vunpack.c.l.b16 %v356
        %v560 = vunpack.c.l.b16 %v357
        %v561 = vunpack.c.l.b16 %v358
        %v562 = vunpack.c.l.b16 %v359
        %v563 = vunpack.c.l.b16 %v360
        %v564 = vunpack.c.l.b16 %v361
        %v565 = vunpack.c.l.b16 %v362
        %v566 = vunpack.c.l.b16 %v363
        %v567 = vunpack.c.l.b16 %v364
        %v568 = vunpack.c.l.b16 %v365
        %v569 = vunpack.c.l.b16 %v366
        %v570 = vunpack.c.l.b16 %v367
        %v571 = vunpack.c.l.b16 %v368
        %v572 = vunpack.c.l.b16 %v369
        %v573 = vunpack.c.l.b16 %v370
        %v574 = vunpack.c.l.b16 %v371
        %v575 = vunpack.c.l.b16 %v372
        %v576 = vunpack.c.l.b16 %v373
        %v577 = vunpack.c.l.b16 %v374
        %v578 = vunpack.c.l.b16 %v375
        %v579 = vunpack.c.l.b16 %v376
        %v580 = vunpack.c.l.b16 %v377
        %v581 = vunpack.c.l.b16 %v378
        %v582 = vunpack.c.l.b16 %v379
        %v583 = vunpack.c.l.b16 %v380
        %v584 = vunpack.c.l.b16 %v381
        %v585 = vunpack.c.l.b16 %v382
        %v586 = vunpack.c.l.b16 %v383
        %v587 = vunpack.c.l.b16 %v384
        %v588 = vunpack.c.l.b16 %v385
        %v589 = vunpack.c.l.b16 %v386
        %v590 = vunpack.c.l.b16 %v387
        %v591 = vunpack.c.l.b16 %v388
        %v592 = vunpack.c.l.b16 %v389
        %v593 = vunpack.c.l.b16 %v390
        %v594 = vunpack.c.l.b16 %v391
        %v595 = vunpack.c.l.b16 %v392
        %v596 = vunpack.c.l.b16 %v393
        %v597 = vunpack.c.l.b16 %v394
        %v598 = vunpack.c.l.b16 %v395
        %v599 = vunpack.c.l.b16 %v396
        %v600 = vunpack.c.l.b16 %v397
        %v601 = vunpack.c.l.b16 %v398
        %v602 = vunpack.c.l.b16 %v399
        %v603 = vunpack.c.l.b16 %v400
        %v604 = vunpack.c.l.b16 %v401
        %v605 = vunpack.c.l.b16 %v402
        %v606 = vunpack.c.l.b16 %v403
        %v607 = vunpack.c.l.b16 %v404
        %v608 = vunpack.c.l.b16 %v405
        %v609 = vunpack.c.l.b16 %v406
        %v610 = vunpack.c.l.b16 %v407
        %v611 = vunpack.c.l.b16 %v408
        %v612 = vunpack.c.l.b16 %v409
        %v613 = vunpack.c.l.b16 %v410
        %v614 = vunpack.c.l.b16 %v411
        %v615 = vunpack.c.l.b16 %v412
        %v616 = vunpack.c.l.b16 %v413
        %v617 = vunpack.c.l.b16 %v414
        %v618 = vunpack.c.l.b16 %v415
        %v619 = vpack.c.b16 %v522, %v521
        %v620 = vpack.c.b16 %v524, %v523
        %v621 = vpack.c.b16 %v526, %v525
        %v622 = vpack.c.b16 %v528, %v527
        %v623 = vpack.c.b16 %v530, %v529
        %v624 = vpack.c.b16 %v532, %v531
        %v625 = vpack.c.b16 %v534, %v533
        %v626 = vpack.c.b16 %v536, %v535
        %v627 = vpack.c.b16 %v538, %v537
        %v628 = vpack.c.b16 %v540, %v539
        %v629 = vpack.c.b16 %v542, %v541
        %v630 = vpack.c.b16 %v544, %v543
        %v631 = vpack.c.b16 %v546, %v545
        %v632 = vpack.c.b16 %v548, %v547
        %v633 = vpack.c.b16 %v550, %v549
        %v634 = vpack.c.b16 %v552, %v551
        %v635 = vpack.c.b16 %v554, %v553
        %v636 = vpack.c.b16 %v556, %v555
        %v637 = vpack.c.b16 %v558, %v557
        %v638 = vpack.c.b16 %v560, %v559
        %v639 = vpack.c.b16 %v562, %v561
        %v640 = vpack.c.b16 %v564, %v563
        %v641 = vpack.c.b16 %v566, %v565
        %v642 = vpack.c.b16 %v568, %v567
        %v643 = vpack.c.b16 %v570, %v569
        %v644 = vpack.c.b16 %v572, %v571
        %v645 = vpack.c.b16 %v574, %v573
        %v646 = vpack.c.b16 %v576, %v575
        %v647 = vpack.c.b16 %v578, %v577
        %v648 = vpack.c.b16 %v580, %v579
        %v649 = vpack.c.b16 %v582, %v581
        %v650 = vpack.c.b16 %v584, %v583
        %v651 = vpack.c.b16 %v586, %v585
        %v652 = vpack.c.b16 %v588, %v587
        %v653 = vpack.c.b16 %v590, %v589
        %v654 = vpack.c.b16 %v592, %v591
        %v655 = vpack.c.b16 %v594, %v593
        %v656 = vpack.c.b16 %v596, %v595
        %v657 = vpack.c.b16 %v598, %v597
        %v658 = vpack.c.b16 %v600, %v599
        %v659 = vpack.c.b16 %v602, %v601
        %v660 = vpack.c.b16 %v604, %v603
        %v661 = vpack.c.b16 %v606, %v605
        %v662 = vpack.c.b16 %v608, %v607
        %v663 = vpack.c.b16 %v610, %v609
        %v664 = vpack.c.b16 %v612, %v611
        %v665 = vpack.c.b16 %v614, %v613
        %v666 = vpack.c.b16 %v616, %v615
        %v667 = vpack.c.b16 %v618, %v617
        %vm717 = vcmask 130048
        %v719 = vsel %vm717, %v310, 0
        %v722 = vsel %vm717, %v317, 0
        %724 = vmatprep.subr.bf16.mxu0 0
        %725 = vmatpush1.bf16.msra.mxu0 %v619
        %726 = vmatprep.subr.bf16.mxu0 0
        %727 = vmatpush1.bf16.msra.mxu0 %v620
        %728 = vmatprep.subr.bf16.mxu0 0
        %729 = vmatpush1.bf16.msra.mxu0 %v621
        %730 = vmatprep.subr.bf16.mxu0 0
        %731 = vmatpush1.bf16.msra.mxu0 %v622
        %732 = vmatprep.subr.bf16.mxu0 0
        %733 = vmatpush1.bf16.msra.mxu0 %v623
        %734 = vmatprep.subr.bf16.mxu0 0
        %735 = vmatpush1.bf16.msra.mxu0 %v624
        %736 = vmatprep.subr.bf16.mxu0 0
        %737 = vmatpush1.bf16.msra.mxu0 %v625
        %738 = vmatprep.subr.bf16.mxu0 0
        %739 = vmatpush1.bf16.msra.mxu0 %v626
        %740 = vmatprep.subr.bf16.mxu0 0
        %741 = vmatpush1.bf16.msra.mxu0 %v627
        %742 = vmatprep.subr.bf16.mxu0 0
        %743 = vmatpush1.bf16.msra.mxu0 %v628
        %744 = vmatprep.subr.bf16.mxu0 0
        %745 = vmatpush1.bf16.msra.mxu0 %v629
        %746 = vmatprep.subr.bf16.mxu0 0
        %747 = vmatpush1.bf16.msra.mxu0 %v630
        %748 = vmatprep.subr.bf16.mxu0 0
        %749 = vmatpush1.bf16.msra.mxu0 %v631
        %750 = vmatprep.subr.bf16.mxu0 0
        %751 = vmatpush1.bf16.msra.mxu0 %v632
        %752 = vmatprep.subr.bf16.mxu0 0
        %753 = vmatpush1.bf16.msra.mxu0 %v633
        %754 = vmatprep.subr.bf16.mxu0 0
        %755 = vmatpush1.bf16.msra.mxu0 %v634
        %756 = vmatprep.mubr.bf16.mxu0 %v305
        %757 = vmatmul.mubr.bf16.gmra.mrb[0].mxu0 %v304
        %v758 = vpop.f32.mrb[0].mxu0
        %v759 = vadd.f32 %v421, %v758
        %v760 = vpop.f32.mrb[0].mxu0
        %v761 = vpop.f32.mrb[0].mxu0
        %v762 = vadd.f32 %v421, %v761
        %v763 = vpop.f32.mrb[0].mxu0
        %764 = vmatprep.mubr.bf16.mxu0 %v312
        %765 = vmatmul.mubr.bf16.gmra.mrb[0].mxu0 %v311
        %v766 = vpop.f32.mrb[0].mxu0
        %v767 = vadd.f32 %v421, %v766
        %v768 = vpop.f32.mrb[0].mxu0
        %v769 = vpop.f32.mrb[0].mxu0
        %v770 = vadd.f32 %v421, %v769
        %v771 = vpop.f32.mrb[0].mxu0
        %772 = vdwg.mxu0
        %773 = vmatprep.subr.bf16.mxu0 0
        %774 = vmatpush1.bf16.msra.mxu0 %v635
        %775 = vmatprep.subr.bf16.mxu0 0
        %776 = vmatpush1.bf16.msra.mxu0 %v636
        %777 = vmatprep.subr.bf16.mxu0 0
        %778 = vmatpush1.bf16.msra.mxu0 %v637
        %779 = vmatprep.subr.bf16.mxu0 0
        %780 = vmatpush1.bf16.msra.mxu0 %v638
        %781 = vmatprep.subr.bf16.mxu0 0
        %782 = vmatpush1.bf16.msra.mxu0 %v639
        %783 = vmatprep.subr.bf16.mxu0 0
        %784 = vmatpush1.bf16.msra.mxu0 %v640
        %785 = vmatprep.subr.bf16.mxu0 0
        %786 = vmatpush1.bf16.msra.mxu0 %v641
        %787 = vmatprep.subr.bf16.mxu0 0
        %788 = vmatpush1.bf16.msra.mxu0 %v642
        %789 = vmatprep.subr.bf16.mxu0 0
        %790 = vmatpush1.bf16.msra.mxu0 %v643
        %791 = vmatprep.subr.bf16.mxu0 0
        %792 = vmatpush1.bf16.msra.mxu0 %v644
        %793 = vmatprep.subr.bf16.mxu0 0
        %794 = vmatpush1.bf16.msra.mxu0 %v645
        %795 = vmatprep.subr.bf16.mxu0 0
        %796 = vmatpush1.bf16.msra.mxu0 %v646
        %797 = vmatprep.subr.bf16.mxu0 0
        %798 = vmatpush1.bf16.msra.mxu0 %v647
        %799 = vmatprep.subr.bf16.mxu0 0
        %800 = vmatpush1.bf16.msra.mxu0 %v648
        %801 = vmatprep.subr.bf16.mxu0 0
        %802 = vmatpush1.bf16.msra.mxu0 %v649
        %803 = vmatprep.subr.bf16.mxu0 0
        %804 = vmatpush1.bf16.msra.mxu0 %v650
        %805 = vmatprep.mubr.bf16.mxu0 %v307
        %806 = vmatmul.mubr.bf16.gmra.mrb[0].mxu0 %v306
        %v807 = vpop.f32.mrb[0].mxu0
        %v808 = vadd.f32 %v759, %v807
        %v809 = vpop.f32.mrb[0].mxu0
        %v810 = vpop.f32.mrb[0].mxu0
        %v811 = vadd.f32 %v762, %v810
        %v812 = vpop.f32.mrb[0].mxu0
        %813 = vmatprep.mubr.bf16.mxu0 %v314
        %814 = vmatmul.mubr.bf16.gmra.mrb[0].mxu0 %v313
        %v815 = vpop.f32.mrb[0].mxu0
        %v816 = vadd.f32 %v767, %v815
        %v817 = vpop.f32.mrb[0].mxu0
        %v818 = vpop.f32.mrb[0].mxu0
        %v819 = vadd.f32 %v770, %v818
        %v820 = vpop.f32.mrb[0].mxu0
        %821 = vdwg.mxu0
        %822 = vmatprep.subr.bf16.mxu0 0
        %823 = vmatpush1.bf16.msra.mxu0 %v651
        %824 = vmatprep.subr.bf16.mxu0 0
        %825 = vmatpush1.bf16.msra.mxu0 %v652
        %826 = vmatprep.subr.bf16.mxu0 0
        %827 = vmatpush1.bf16.msra.mxu0 %v653
        %828 = vmatprep.subr.bf16.mxu0 0
        %829 = vmatpush1.bf16.msra.mxu0 %v654
        %830 = vmatprep.subr.bf16.mxu0 0
        %831 = vmatpush1.bf16.msra.mxu0 %v655
        %832 = vmatprep.subr.bf16.mxu0 0
        %833 = vmatpush1.bf16.msra.mxu0 %v656
        %834 = vmatprep.subr.bf16.mxu0 0
        %835 = vmatpush1.bf16.msra.mxu0 %v657
        %836 = vmatprep.subr.bf16.mxu0 0
        %837 = vmatpush1.bf16.msra.mxu0 %v658
        %838 = vmatprep.subr.bf16.mxu0 0
        %839 = vmatpush1.bf16.msra.mxu0 %v659
        %840 = vmatprep.subr.bf16.mxu0 0
        %841 = vmatpush1.bf16.msra.mxu0 %v660
        %842 = vmatprep.subr.bf16.mxu0 0
        %843 = vmatpush1.bf16.msra.mxu0 %v661
        %844 = vmatprep.subr.bf16.mxu0 0
        %845 = vmatpush1.bf16.msra.mxu0 %v662
        %846 = vmatprep.subr.bf16.mxu0 0
        %847 = vmatpush1.bf16.msra.mxu0 %v663
        %848 = vmatprep.subr.bf16.mxu0 0
        %849 = vmatpush1.bf16.msra.mxu0 %v664
        %850 = vmatprep.subr.bf16.mxu0 0
        %851 = vmatpush1.bf16.msra.mxu0 %v665
        %852 = vmatprep.subr.bf16.mxu0 0
        %853 = vmatpush1.bf16.msra.mxu0 %v666
        %854 = vmatprep.mubr.bf16.mxu0 %v309
        %855 = vmatmul.mubr.bf16.gmra.mrb[0].mxu0 %v308
        %v856 = vpop.f32.mrb[0].mxu0
        %v857 = vadd.f32 %v808, %v856
        %v858 = vpop.f32.mrb[0].mxu0
        %v859 = vpop.f32.mrb[0].mxu0
        %v860 = vadd.f32 %v811, %v859
        %v861 = vpop.f32.mrb[0].mxu0
        %862 = vmatprep.mubr.bf16.mxu0 %v316
        %863 = vmatmul.mubr.bf16.gmra.mrb[0].mxu0 %v315
        %v864 = vpop.f32.mrb[0].mxu0
        %v865 = vadd.f32 %v816, %v864
        %v866 = vpop.f32.mrb[0].mxu0
        %v867 = vpop.f32.mrb[0].mxu0
        %v868 = vadd.f32 %v819, %v867
        %v869 = vpop.f32.mrb[0].mxu0
        %870 = vdwg.mxu0
        %871 = vmatprep.subr.bf16.mxu0 0
        %872 = vmatpush1.bf16.msra.mxu0 %v667
        %873 = vmatprep.subr.bf16.mxu0 0
        %874 = vmatpush1.bf16.msra.mxu0 0
        %875 = vmatprep.subr.bf16.mxu0 0
        %876 = vmatpush1.bf16.msra.mxu0 0
        %877 = vmatprep.subr.bf16.mxu0 0
        %878 = vmatpush1.bf16.msra.mxu0 0
        %879 = vmatprep.subr.bf16.mxu0 0
        %880 = vmatpush1.bf16.msra.mxu0 0
        %881 = vmatprep.subr.bf16.mxu0 0
        %882 = vmatpush1.bf16.msra.mxu0 0
        %883 = vmatprep.subr.bf16.mxu0 0
        %884 = vmatpush1.bf16.msra.mxu0 0
        %885 = vmatprep.subr.bf16.mxu0 0
        %886 = vmatpush1.bf16.msra.mxu0 0
        %887 = vmatprep.subr.bf16.mxu0 0
        %888 = vmatpush1.bf16.msra.mxu0 0
        %889 = vmatprep.subr.bf16.mxu0 0
        %890 = vmatpush1.bf16.msra.mxu0 0
        %891 = vmatprep.subr.bf16.mxu0 0
        %892 = vmatpush1.bf16.msra.mxu0 0
        %893 = vmatprep.subr.bf16.mxu0 0
        %894 = vmatpush1.bf16.msra.mxu0 0
        %895 = vmatprep.subr.bf16.mxu0 0
        %896 = vmatpush1.bf16.msra.mxu0 0
        %897 = vmatprep.subr.bf16.mxu0 0
        %898 = vmatpush1.bf16.msra.mxu0 0
        %899 = vmatprep.subr.bf16.mxu0 0
        %900 = vmatpush1.bf16.msra.mxu0 0
        %901 = vmatprep.subr.bf16.mxu0 0
        %902 = vmatpush1.bf16.msra.mxu0 0
        %903 = vmatprep.mubr.bf16.mxu0 0
        %904 = vmatmul.mubr.bf16.gmra.mrb[0].mxu0 %v719
        %v905 = vpop.f32.mrb[0].mxu0
        %v906 = vadd.f32 %v857, %v905
        %v907 = vpop.f32.mrb[0].mxu0
        %v908 = vpop.f32.mrb[0].mxu0
        %v909 = vadd.f32 %v860, %v908
        %v910 = vpop.f32.mrb[0].mxu0
        %911 = vmatprep.mubr.bf16.mxu0 0
        %912 = vmatmul.mubr.bf16.gmra.mrb[0].mxu0 %v722
        %v913 = vpop.f32.mrb[0].mxu0
        %v914 = vadd.f32 %v865, %v913
        %v915 = vpop.f32.mrb[0].mxu0
        %v916 = vpop.f32.mrb[0].mxu0
        %v917 = vadd.f32 %v868, %v916
        %v918 = vpop.f32.mrb[0].mxu0
        %919 = vdwg.mxu0
        %v920 = vmax.f32 %v906, 0.0
        %v921 = vmax.f32 %v909, 0.0
        %v922 = vmax.f32 %v914, 0.0
        %v923 = vmax.f32 %v917, 0.0
        %v924 = vpack.c.bf16 %v921, %v920
        %v925 = vpack.c.bf16 %v923, %v922
        %v926 = vld [vmem:[#allocation7] sm:$0xf]
        %v927 = vld [vmem:[#allocation7 + $0x4] sm:$0xf]
        %v928 = vld [vmem:[#allocation7 + $0x8] sm:$0xf]
        %v929 = vld [vmem:[#allocation7 + $0xc] sm:$0xf]
        %v930 = vld [vmem:[#allocation7 + $0x10] sm:$0xf]
        %v931 = vld [vmem:[#allocation7 + $0x14] sm:$0xf]
        %v932 = vld [vmem:[#allocation7 + $0x18] sm:$0xf]
        %v933 = vld [vmem:[#allocation7 + $0x1c] sm:$0xf]
        %v934 = vld [vmem:[#allocation7 + $0x20] sm:$0xf]
        %v935 = vld [vmem:[#allocation7 + $0x24] sm:$0xf]
        %v936 = vld [vmem:[#allocation7 + $0x28] sm:$0xf]
        %v937 = vld [vmem:[#allocation7 + $0x2c] sm:$0xf]
        %v938 = vld [vmem:[#allocation7 + $0x30] sm:$0xf]
        %v939 = vld [vmem:[#allocation7 + $0x34] sm:$0xf]
        %v940 = vld [vmem:[#allocation7 + $0x38] sm:$0xf]
        %v941 = vld [vmem:[#allocation7 + $0x3c] sm:$0xf]
        %v942 = vld [vmem:[%s4] sm:$0x1]
        %v944 = vlaneseq
        %v945 = vshrl.u32 %v944, 7
        %v946 = vsub.s32 0, %v945
        %v947 = vrot.slane %v942, %v946
        %v965 = vunpack.c.l.b16 %v926
        %v966 = vunpack.c.l.b16 %v927
        %v967 = vunpack.c.l.b16 %v928
        %v968 = vunpack.c.l.b16 %v929
        %v969 = vunpack.c.l.b16 %v930
        %v970 = vunpack.c.l.b16 %v931
        %v971 = vunpack.c.l.b16 %v932
        %v972 = vunpack.c.l.b16 %v933
        %v973 = vunpack.c.l.b16 %v934
        %v974 = vunpack.c.l.b16 %v935
        %v975 = vunpack.c.l.b16 %v936
        %v976 = vunpack.c.l.b16 %v937
        %v977 = vunpack.c.l.b16 %v938
        %v978 = vunpack.c.l.b16 %v939
        %v979 = vunpack.c.l.b16 %v940
        %v980 = vunpack.c.l.b16 %v941
        %v981 = vpack.c.b16 %v966, %v965
        %v982 = vpack.c.b16 %v968, %v967
        %v983 = vpack.c.b16 %v970, %v969
        %v984 = vpack.c.b16 %v972, %v971
        %v985 = vpack.c.b16 %v974, %v973
        %v986 = vpack.c.b16 %v976, %v975
        %v987 = vpack.c.b16 %v978, %v977
        %v988 = vpack.c.b16 %v980, %v979
        %997 = vmatprep.subr.bf16.mxu0 0
        %998 = vmatpush1.bf16.msra.mxu0 %v981
        %999 = vmatprep.subr.bf16.mxu0 0
        %1000 = vmatpush1.bf16.msra.mxu0 %v982
        %1001 = vmatprep.subr.bf16.mxu0 0
        %1002 = vmatpush1.bf16.msra.mxu0 %v983
        %1003 = vmatprep.subr.bf16.mxu0 0
        %1004 = vmatpush1.bf16.msra.mxu0 %v984
        %1005 = vmatprep.subr.bf16.mxu0 0
        %1006 = vmatpush1.bf16.msra.mxu0 %v985
        %1007 = vmatprep.subr.bf16.mxu0 0
        %1008 = vmatpush1.bf16.msra.mxu0 %v986
        %1009 = vmatprep.subr.bf16.mxu0 0
        %1010 = vmatpush1.bf16.msra.mxu0 %v987
        %1011 = vmatprep.subr.bf16.mxu0 0
        %1012 = vmatpush1.bf16.msra.mxu0 %v988
        %1013 = vmatprep.subr.bf16.mxu0 0
        %1014 = vmatpush1.bf16.msra.mxu0 0
        %1015 = vmatprep.subr.bf16.mxu0 0
        %1016 = vmatpush1.bf16.msra.mxu0 0
        %1017 = vmatprep.subr.bf16.mxu0 0
        %1018 = vmatpush1.bf16.msra.mxu0 0
        %1019 = vmatprep.subr.bf16.mxu0 0
        %1020 = vmatpush1.bf16.msra.mxu0 0
        %1021 = vmatprep.subr.bf16.mxu0 0
        %1022 = vmatpush1.bf16.msra.mxu0 0
        %1023 = vmatprep.subr.bf16.mxu0 0
        %1024 = vmatpush1.bf16.msra.mxu0 0
        %1025 = vmatprep.subr.bf16.mxu0 0
        %1026 = vmatpush1.bf16.msra.mxu0 0
        %1027 = vmatprep.subr.bf16.mxu0 0
        %1028 = vmatpush1.bf16.msra.mxu0 0
        %1029 = vmatprep.mubr.bf16.mxu0 0
        %1030 = vmatmul.mubr.bf16.gmra.mrb[0].mxu0 %v924
        %v1031 = vpop.f32.mrb[0].mxu0
        %v1032 = vadd.f32 %v947, %v1031
        %v1033 = vpop.f32.mrb[0].mxu0
        %v1034 = vpop.f32.mrb[0].mxu0
        %v1035 = vadd.f32 %v947, %v1034
        %v1036 = vpop.f32.mrb[0].mxu0
        %1037 = vmatprep.mubr.bf16.mxu0 0
        %1038 = vmatmul.mubr.bf16.gmra.mrb[0].mxu0 %v925
        %v1039 = vpop.f32.mrb[0].mxu0
        %v1040 = vadd.f32 %v947, %v1039
        %v1041 = vpop.f32.mrb[0].mxu0
        %v1042 = vpop.f32.mrb[0].mxu0
        %v1043 = vadd.f32 %v947, %v1042
        %v1044 = vpop.f32.mrb[0].mxu0
        %1045 = vdwg.mxu0
        %v1046 = vpack.c.bf16 %v1035, %v1032
        %v1047 = vpack.c.bf16 %v1043, %v1040
        %v1050 = vunpack.c.l.b16 %v1046
        %v1051 = vunpack.c.h.b16 %v1046
        %v1052 = vunpack.c.l.b16 %v1047
        %v1053 = vunpack.c.h.b16 %v1047
        %v1054 = vpack.c.b16 %v1050, %v1050
        %v1055 = vpack.c.b16 %v1051, %v1051
        %v1056 = vpack.c.b16 %v1052, %v1052
        %v1057 = vpack.c.b16 %v1053, %v1053
        %1062 = vst [vmem:[%s272] sm:$0xf] %v1054
        %1063 = vst [vmem:[%s272 + $0x4] sm:$0xf] %v1055
        %1064 = vst [vmem:[%s272 + $0x8] sm:$0xf] %v1056
        %1065 = vst [vmem:[%s272 + $0xc] sm:$0xf] %v1057
        %s1066 = sand.u32 %s141, 1
        %s1067 = scalar_lea.sflag [#allocation4], %s1066
        %s1068 = sand.u32 %s141, 1
        %s1069 = smul.addr %s1068, 16
        %s1070 = scalar_lea.vmem [#allocation8], %s1069
        // Predicated region
        $region53: #{tpu_custom_call.1} parent=39 // pred_check
          %p1071 = pneg %p151
        $region54: #{tpu_custom_call.1} parent=39 // pred_check_branch
          %1073 = sbr.rel (%p1071) target = $region56
        $region55: #{tpu_custom_call.1} parent=39 // pred_region
          %s1074 = smul.u32 4, %s23
          %s1076 = ssub.s32 256, 256
          %1077 = vsyncadd %s1067, %s1076
          %s1078 = smul.addr %s1074, 64
          %s1079 = scalar_lea.hbm %s5, %s1078
          %s1080 = sshll.u32 %s1070, 4
          %s1081 = int_to_ptr.vmem [resolvable:$true] %s1080
          %1086 = dma.vmem_to_hbm [thread:$0]  %s1081, 256, %s1079, %s1067, 64, 64, 4
        $region56: #{tpu_custom_call.1} parent=39 // pred_fallthru
          _
      $region40: #{tpu_custom_call.1} parent=5 // pred_fallthru
        _
      %p1087 = scmp.le.s32.totalorder 2, %s18
      // Predicated region
      $region57: #{tpu_custom_call.1} parent=5 // pred_check
        %p1088 = pneg %p1087
      $region58: #{tpu_custom_call.1} parent=5 // pred_check_branch
        %1090 = sbr.rel (%p1088) target = $region60
      $region59: #{tpu_custom_call.1} parent=5 // pred_region
        %s1091 = ssub.s32 %s18, 2
        // Predicated region
        $region61: #{tpu_custom_call.1} parent=59 // pred_check
          %p1092 = pneg %p157
        $region62: #{tpu_custom_call.1} parent=59 // pred_check_branch
          %1094 = sbr.rel (%p1092) target = $region64
        $region63: #{tpu_custom_call.1} parent=59 // pred_region
          %s1095 = sand.u32 %s142, 1
          %s1096 = scalar_lea.sflag [#allocation4], %s1095
          %s1097 = sand.u32 %s142, 1
          %s1098 = smul.addr %s1097, 16
          %s1099 = scalar_lea.vmem [#allocation8], %s1098
          %1100 = dma.done %s1096, 256
        $region64: #{tpu_custom_call.1} parent=59 // pred_fallthru
          _
      $region60: #{tpu_custom_call.1} parent=5 // pred_fallthru
        _
    $region6: #{tpu_custom_call.1} parent=1 // loop_footer
      %s22 = sadd.s32 1, %s18
    $region7: #{tpu_custom_call.1} parent=1 // loop_footer_branch
      %17 = sbr.rel target = $region3
    $region8: #{tpu_custom_call.1} parent=1 // loop_exit
      _
    %1101 = vsyncpa [#allocation3], 1
    %s1102 = scalar_lea.sflag [#allocation3], 1
    %1103 = vsyncpa %s1102, 1
    %1104 = vsyncpa [#allocation6], 1
    %1105 = vsyncpa [#allocation4], 1
    %s1106 = scalar_lea.sflag [#allocation4], 1
    %1107 = vsyncpa %s1106, 1

</llo_original>
